<compile_context>
chip_gen: v7x
topology: tpu7x:2x2x1
jax: 0.10.0
libtpu: 0.0.40
codegen_flags: <defaults>
</compile_context>

<pallas_src>
import functools

import jax
import jax.numpy as jnp
from jax.experimental import pallas as pl
from jax.experimental.pallas import tpu as pltpu

BN_EPS = 1e-5


def _mlp_kernel(
    x_ref,        # (B, D_in)           bf16, VMEM
    w1_ref,       # (D_in, H)           bf16, VMEM
    w2_ref,       # (H, H)              bf16, VMEM
    vecs_ref,     # (8, H)              f32,  VMEM  rows: b1,b2,g2,be2,b3,g3,be3,pad
    b4_ref,       # (1, D_out_pad)      f32,  VMEM
    w3_hbm,       # (H, H)              bf16, HBM (pl.ANY)
    w4_hbm,       # (H, D_out_pad)      bf16, HBM (pl.ANY)
    out_ref,      # (B, D_out_pad)      f32,  VMEM (lane-dense)
    w3_vmem,      # scratch (H, H)      bf16
    w4_vmem,      # scratch (H, D_out_pad) bf16
    sem,          # DMA semaphores (2,)
):
    # Kick off later-layer weight DMAs so they overlap the first matmuls.
    cp3 = pltpu.make_async_copy(w3_hbm, w3_vmem, sem.at[0])
    cp4 = pltpu.make_async_copy(w4_hbm, w4_vmem, sem.at[1])
    cp3.start()
    cp4.start()

    vecs = vecs_ref[...]                                   # (8, H) f32
    b1, b2, g2, be2 = vecs[0:1], vecs[1:2], vecs[2:3], vecs[3:4]
    b3, g3, be3 = vecs[4:5], vecs[5:6], vecs[6:7]

    # Linear(in -> hidden) + ReLU  (bf16 MXU operands, f32 accumulation)
    x = x_ref[...]
    h = jnp.dot(x, w1_ref[...], preferred_element_type=jnp.float32) + b1
    h = jnp.maximum(h, 0.0)

    def residual_block(h, w_bf16, b, gamma, beta):
        o = jnp.dot(h.astype(jnp.bfloat16), w_bf16,
                    preferred_element_type=jnp.float32) + b
        # BatchNorm1d, training-mode: batch mean, biased batch variance (f32).
        mean = jnp.mean(o, axis=0, keepdims=True)
        var = jnp.mean((o - mean) * (o - mean), axis=0, keepdims=True)
        o = (o - mean) * jax.lax.rsqrt(var + BN_EPS) * gamma + beta
        return jnp.maximum(o, 0.0) + h

    h = residual_block(h, w2_ref[...], b2, g2, be2)

    cp3.wait()
    h = residual_block(h, w3_vmem[...], b3, g3, be3)

    cp4.wait()
    out = jnp.dot(h.astype(jnp.bfloat16), w4_vmem[...],
                  preferred_element_type=jnp.float32) + b4_ref[...]
    out_ref[...] = out.astype(out_ref.dtype)               # full-lane store


def prepare_params(params):
    """One-time host-side prep (call OUTSIDE jit): transpose (out,in)->(in,out),
    cast matmul weights to bf16, pad the final layer to a 128-lane-dense slab,
    and pack the six per-feature vectors + b1 into a single (8, H) array."""
    H = params["w1"].shape[0]
    d_out = params["w4"].shape[0]
    d_out_pad = max(128, ((d_out + 127) // 128) * 128)

    w1 = params["w1"].T.astype(jnp.bfloat16)               # (D_in, H)
    w2 = params["w2"].T.astype(jnp.bfloat16)               # (H, H)
    w3 = params["w3"].T.astype(jnp.bfloat16)               # (H, H)
    w4 = jnp.zeros((H, d_out_pad), jnp.bfloat16)
    w4 = w4.at[:, :d_out].set(params["w4"].T.astype(jnp.bfloat16))
    b4 = jnp.zeros((1, d_out_pad), jnp.float32)
    b4 = b4.at[0, :d_out].set(params["b4"])

    vecs = jnp.stack(
        [params["b1"], params["b2"], params["g2"], params["be2"],
         params["b3"], params["g3"], params["be3"],
         jnp.zeros((H,), jnp.float32)],
        axis=0,
    )                                                      # (8, H) f32

    return {"w1": w1, "w2": w2, "w3": w3, "w4": w4, "b4": b4, "vecs": vecs}


@functools.partial(jax.jit, static_argnames=("d_out",))
def mlp_forward(x, prep, d_out):
    """x: (B, seq_len_encoder, dim_encoder) -> (B, seq_len_decoder*dim_decoder, 1)."""
    B = x.shape[0]
    x_flat = x.reshape(B, -1).astype(jnp.bfloat16)          # == x.view(B, -1)

    w1, w2, w3, w4 = prep["w1"], prep["w2"], prep["w3"], prep["w4"]
    b4, vecs = prep["b4"], prep["vecs"]
    D_in, H = w1.shape
    d_out_pad = w4.shape[1]

    flops = 2 * B * (D_in * H + 2 * H * H + H * d_out_pad)
    bytes_in = sum(int(a.size) * a.dtype.itemsize
                   for a in (x_flat, w1, w2, w3, w4, b4, vecs))
    cost = pl.CostEstimate(flops=flops, transcendentals=0,
                           bytes_accessed=bytes_in + B * d_out_pad * 4)

    vmem = pl.BlockSpec(memory_space=pltpu.MemorySpace.VMEM)
    hbm = pl.BlockSpec(memory_space=pl.ANY)

    out = pl.pallas_call(
        _mlp_kernel,
        out_shape=jax.ShapeDtypeStruct((B, d_out_pad), jnp.float32),
        in_specs=[vmem, vmem, vmem, vmem, vmem, hbm, hbm],
        out_specs=vmem,
        scratch_shapes=[
            pltpu.VMEM(w3.shape, jnp.bfloat16),
            pltpu.VMEM(w4.shape, jnp.bfloat16),
            pltpu.SemaphoreType.DMA((2,)),
        ],
        cost_estimate=cost,
    )(x_flat, w1, w2, vecs, b4, w3, w4)

    return out[:, :d_out, None]                              # slice pad, unsqueeze(2)


def init_params(key, seq_len_encoder, seq_len_decoder, dim_encoder, dim_decoder,
                hidden_dim):
    """Deterministic synthetic parameters, shapes matching the PyTorch module."""
    d_in = seq_len_encoder * dim_encoder
    d_out = seq_len_decoder * dim_decoder
    ks = jax.random.split(key, 8)

    def lin(k, out_dim, in_dim):
        bound = 1.0 / jnp.sqrt(in_dim)
        kw, kb = jax.random.split(k)
        w = jax.random.uniform(kw, (out_dim, in_dim), jnp.float32, -bound, bound)
        b = jax.random.uniform(kb, (out_dim,), jnp.float32, -bound, bound)
        return w, b

    w1, b1 = lin(ks[0], hidden_dim, d_in)
    w2, b2 = lin(ks[1], hidden_dim, hidden_dim)
    w3, b3 = lin(ks[2], hidden_dim, hidden_dim)
    w4, b4 = lin(ks[3], d_out, hidden_dim)

    g2 = 1.0 + 0.01 * jax.random.normal(ks[4], (hidden_dim,), jnp.float32)
    be2 = 0.01 * jax.random.normal(ks[5], (hidden_dim,), jnp.float32)
    g3 = 1.0 + 0.01 * jax.random.normal(ks[6], (hidden_dim,), jnp.float32)
    be3 = 0.01 * jax.random.normal(ks[7], (hidden_dim,), jnp.float32)

    return {
        "w1": w1, "b1": b1,
        "w2": w2, "b2": b2, "g2": g2, "be2": be2,
        "w3": w3, "b3": b3, "g3": g3, "be3": be3,
        "w4": w4, "b4": b4,
    }


def reference_forward(x, params):
    """Pure-JAX reference mirroring the PyTorch forward, using the same bf16
    matmul-operand / f32-accumulation numerics as the kernel."""
    def mm(a, w):
        return jnp.dot(a.astype(jnp.bfloat16), w.T.astype(jnp.bfloat16),
                       preferred_element_type=jnp.float32)

    h = x.reshape(x.shape[0], -1)
    h = jnp.maximum(mm(h, params["w1"]) + params["b1"], 0.0)

    def rb(h, w, b, g, be):
        o = mm(h, w) + b
        m = o.mean(0, keepdims=True)
        v = ((o - m) ** 2).mean(0, keepdims=True)
        o = (o - m) * jax.lax.rsqrt(v + BN_EPS) * g + be
        return jnp.maximum(o, 0.0) + h

    h = rb(h, params["w2"], params["b2"], params["g2"], params["be2"])
    h = rb(h, params["w3"], params["b3"], params["g3"], params["be3"])
    o = mm(h, params["w4"]) + params["b4"]
    return o[:, :, None]


if __name__ == "__main__":
    # Small shapes consistent with the module's forward.
    B = 8
    seq_len_encoder, dim_encoder = 8, 4     # D_in  = 32
    seq_len_decoder, dim_decoder = 4, 2     # D_out = 8
    hidden_dim = 32
    dropoutrate = 0.1                        # unused in forward (as in PyTorch)

    key = jax.random.PRNGKey(0)
    k_x, k_p = jax.random.split(key)

    x = jax.random.normal(k_x, (B, seq_len_encoder, dim_encoder), jnp.float32)
    params = init_params(k_p, seq_len_encoder, seq_len_decoder,
                         dim_encoder, dim_decoder, hidden_dim)
    prep = prepare_params(params)            # one-time: transpose/cast/pad/pack
    d_out = seq_len_decoder * dim_decoder

    out = mlp_forward(x, prep, d_out)
    out = jax.block_until_ready(out)

    ref = reference_forward(x, params)
    assert out.shape == (B, d_out, 1), out.shape
    assert jnp.allclose(out, ref, atol=2e-3, rtol=2e-3), "mismatch vs JAX reference"

    print("KERNEL_OK")
</pallas_src>

<mosaic_0001>
module attributes {stable_mosaic.version = 11 : i64} {
  func.func @_mlp_kernel(%arg0: memref<8x32xbf16, #tpu.memory_space<vmem>>, %arg1: memref<32x32xbf16, #tpu.memory_space<vmem>>, %arg2: memref<32x32xbf16, #tpu.memory_space<vmem>>, %arg3: memref<8x32xf32, #tpu.memory_space<vmem>>, %arg4: memref<1x128xf32, #tpu.memory_space<vmem>>, %arg5: memref<32x32xbf16, #tpu.memory_space<any>>, %arg6: memref<32x128xbf16, #tpu.memory_space<any>>, %arg7: memref<8x128xf32, #tpu.memory_space<vmem>>, %arg8: memref<32x32xbf16, #tpu.memory_space<vmem>>, %arg9: memref<32x128xbf16, #tpu.memory_space<vmem>>, %arg10: memref<2x!tpu.dma_semaphore, #tpu.memory_space<semaphore_mem>>) attributes {dimension_semantics = [], scalar_prefetch = 0 : i64, scratch_operands = 3 : i64, tpu.core_type = #tpu.core_type<tc>} {
    %c0_i32 = arith.constant 0 : i32
    %0 = tpu.memref_slice %arg10[%c0_i32] : memref<2x!tpu.dma_semaphore, #tpu.memory_space<semaphore_mem>> -> memref<1x!tpu.dma_semaphore, #tpu.memory_space<semaphore_mem>>
    %1 = tpu.memref_squeeze %0 : memref<1x!tpu.dma_semaphore, #tpu.memory_space<semaphore_mem>> -> memref<!tpu.dma_semaphore, #tpu.memory_space<semaphore_mem>>
    tpu.enqueue_dma source(%arg5 : memref<32x32xbf16, #tpu.memory_space<any>>) target(%arg8 : memref<32x32xbf16, #tpu.memory_space<vmem>>) target_semaphore(%1 : memref<!tpu.dma_semaphore, #tpu.memory_space<semaphore_mem>>)
    %c1_i32 = arith.constant 1 : i32
    %2 = tpu.memref_slice %arg10[%c1_i32] : memref<2x!tpu.dma_semaphore, #tpu.memory_space<semaphore_mem>> -> memref<1x!tpu.dma_semaphore, #tpu.memory_space<semaphore_mem>>
    %3 = tpu.memref_squeeze %2 : memref<1x!tpu.dma_semaphore, #tpu.memory_space<semaphore_mem>> -> memref<!tpu.dma_semaphore, #tpu.memory_space<semaphore_mem>>
    tpu.enqueue_dma source(%arg6 : memref<32x128xbf16, #tpu.memory_space<any>>) target(%arg9 : memref<32x128xbf16, #tpu.memory_space<vmem>>) target_semaphore(%3 : memref<!tpu.dma_semaphore, #tpu.memory_space<semaphore_mem>>)
    %c0 = arith.constant 0 : index
    %c0_0 = arith.constant 0 : index
    %4 = vector.load %arg3[%c0, %c0_0] : memref<8x32xf32, #tpu.memory_space<vmem>>, vector<8x32xf32>
    %5 = vector.extract_strided_slice %4 {offsets = [0, 0], sizes = [1, 32], strides = [1, 1]} : vector<8x32xf32> to vector<1x32xf32>
    %6 = vector.extract_strided_slice %4 {offsets = [1, 0], sizes = [1, 32], strides = [1, 1]} : vector<8x32xf32> to vector<1x32xf32>
    %7 = vector.extract_strided_slice %4 {offsets = [2, 0], sizes = [1, 32], strides = [1, 1]} : vector<8x32xf32> to vector<1x32xf32>
    %8 = vector.extract_strided_slice %4 {offsets = [3, 0], sizes = [1, 32], strides = [1, 1]} : vector<8x32xf32> to vector<1x32xf32>
    %9 = vector.extract_strided_slice %4 {offsets = [4, 0], sizes = [1, 32], strides = [1, 1]} : vector<8x32xf32> to vector<1x32xf32>
    %10 = vector.extract_strided_slice %4 {offsets = [5, 0], sizes = [1, 32], strides = [1, 1]} : vector<8x32xf32> to vector<1x32xf32>
    %11 = vector.extract_strided_slice %4 {offsets = [6, 0], sizes = [1, 32], strides = [1, 1]} : vector<8x32xf32> to vector<1x32xf32>
    %c0_1 = arith.constant 0 : index
    %c0_2 = arith.constant 0 : index
    %12 = vector.load %arg0[%c0_1, %c0_2] : memref<8x32xbf16, #tpu.memory_space<vmem>>, vector<8x32xbf16>
    %c0_3 = arith.constant 0 : index
    %c0_4 = arith.constant 0 : index
    %13 = vector.load %arg1[%c0_3, %c0_4] : memref<32x32xbf16, #tpu.memory_space<vmem>>, vector<32x32xbf16>
    %cst = arith.constant dense<0.000000e+00> : vector<8x32xf32>
    %14 = tpu.matmul %12, %13, %cst {dimension_numbers = #tpu.dot_dimension_numbers<[1], [0], [0], [1], [0, 0, 1, 1], [], []>} : vector<8x32xbf16>, vector<32x32xbf16>, vector<8x32xf32> -> vector<8x32xf32>
    %15 = vector.broadcast %5 : vector<1x32xf32> to vector<8x32xf32>
    %16 = arith.addf %14, %15 : vector<8x32xf32>
    %cst_5 = arith.constant 0.000000e+00 : f32
    %17 = vector.broadcast %cst_5 : f32 to vector<8x32xf32>
    %18 = arith.maximumf %16, %17 : vector<8x32xf32>
    %c0_6 = arith.constant 0 : index
    %c0_7 = arith.constant 0 : index
    %19 = vector.load %arg2[%c0_6, %c0_7] : memref<32x32xbf16, #tpu.memory_space<vmem>>, vector<32x32xbf16>
    %20 = arith.truncf %18 : vector<8x32xf32> to vector<8x32xbf16>
    %cst_8 = arith.constant dense<0.000000e+00> : vector<8x32xf32>
    %21 = tpu.matmul %20, %19, %cst_8 {dimension_numbers = #tpu.dot_dimension_numbers<[1], [0], [0], [1], [0, 0, 1, 1], [], []>} : vector<8x32xbf16>, vector<32x32xbf16>, vector<8x32xf32> -> vector<8x32xf32>
    %22 = vector.broadcast %6 : vector<1x32xf32> to vector<8x32xf32>
    %23 = arith.addf %21, %22 : vector<8x32xf32>
    %cst_9 = arith.constant dense<0.000000e+00> : vector<32xf32>
    %24 = vector.multi_reduction <add>, %23, %cst_9 [0] : vector<8x32xf32> to vector<32xf32>
    %25 = vector.shape_cast %24 : vector<32xf32> to vector<1x32xf32>
    %cst_10 = arith.constant 8.000000e+00 : f32
    %26 = vector.broadcast %cst_10 : f32 to vector<1x32xf32>
    %27 = arith.divf %25, %26 : vector<1x32xf32>
    %28 = vector.broadcast %27 : vector<1x32xf32> to vector<8x32xf32>
    %29 = arith.subf %23, %28 : vector<8x32xf32>
    %30 = vector.broadcast %27 : vector<1x32xf32> to vector<8x32xf32>
    %31 = arith.subf %23, %30 : vector<8x32xf32>
    %32 = arith.mulf %29, %31 : vector<8x32xf32>
    %cst_11 = arith.constant dense<0.000000e+00> : vector<32xf32>
    %33 = vector.multi_reduction <add>, %32, %cst_11 [0] : vector<8x32xf32> to vector<32xf32>
    %34 = vector.shape_cast %33 : vector<32xf32> to vector<1x32xf32>
    %cst_12 = arith.constant 8.000000e+00 : f32
    %35 = vector.broadcast %cst_12 : f32 to vector<1x32xf32>
    %36 = arith.divf %34, %35 : vector<1x32xf32>
    %37 = vector.broadcast %27 : vector<1x32xf32> to vector<8x32xf32>
    %38 = arith.subf %23, %37 : vector<8x32xf32>
    %cst_13 = arith.constant 9.99999974E-6 : f32
    %39 = vector.broadcast %cst_13 : f32 to vector<1x32xf32>
    %40 = arith.addf %36, %39 : vector<1x32xf32>
    %41 = math.rsqrt %40 : vector<1x32xf32>
    %42 = vector.broadcast %41 : vector<1x32xf32> to vector<8x32xf32>
    %43 = arith.mulf %38, %42 : vector<8x32xf32>
    %44 = vector.broadcast %7 : vector<1x32xf32> to vector<8x32xf32>
    %45 = arith.mulf %43, %44 : vector<8x32xf32>
    %46 = vector.broadcast %8 : vector<1x32xf32> to vector<8x32xf32>
    %47 = arith.addf %45, %46 : vector<8x32xf32>
    %cst_14 = arith.constant 0.000000e+00 : f32
    %48 = vector.broadcast %cst_14 : f32 to vector<8x32xf32>
    %49 = arith.maximumf %47, %48 : vector<8x32xf32>
    %50 = arith.addf %49, %18 : vector<8x32xf32>
    %c0_i32_15 = arith.constant 0 : i32
    %51 = tpu.memref_slice %arg10[%c0_i32_15] : memref<2x!tpu.dma_semaphore, #tpu.memory_space<semaphore_mem>> -> memref<1x!tpu.dma_semaphore, #tpu.memory_space<semaphore_mem>>
    %52 = tpu.memref_squeeze %51 : memref<1x!tpu.dma_semaphore, #tpu.memory_space<semaphore_mem>> -> memref<!tpu.dma_semaphore, #tpu.memory_space<semaphore_mem>>
    tpu.wait_dma2 semaphore(%52 : memref<!tpu.dma_semaphore, #tpu.memory_space<semaphore_mem>>) src(%arg5 : memref<32x32xbf16, #tpu.memory_space<any>>) dst(%arg8 : memref<32x32xbf16, #tpu.memory_space<vmem>>)
    %c0_16 = arith.constant 0 : index
    %c0_17 = arith.constant 0 : index
    %53 = vector.load %arg8[%c0_16, %c0_17] : memref<32x32xbf16, #tpu.memory_space<vmem>>, vector<32x32xbf16>
    %54 = arith.truncf %50 : vector<8x32xf32> to vector<8x32xbf16>
    %cst_18 = arith.constant dense<0.000000e+00> : vector<8x32xf32>
    %55 = tpu.matmul %54, %53, %cst_18 {dimension_numbers = #tpu.dot_dimension_numbers<[1], [0], [0], [1], [0, 0, 1, 1], [], []>} : vector<8x32xbf16>, vector<32x32xbf16>, vector<8x32xf32> -> vector<8x32xf32>
    %56 = vector.broadcast %9 : vector<1x32xf32> to vector<8x32xf32>
    %57 = arith.addf %55, %56 : vector<8x32xf32>
    %cst_19 = arith.constant dense<0.000000e+00> : vector<32xf32>
    %58 = vector.multi_reduction <add>, %57, %cst_19 [0] : vector<8x32xf32> to vector<32xf32>
    %59 = vector.shape_cast %58 : vector<32xf32> to vector<1x32xf32>
    %cst_20 = arith.constant 8.000000e+00 : f32
    %60 = vector.broadcast %cst_20 : f32 to vector<1x32xf32>
    %61 = arith.divf %59, %60 : vector<1x32xf32>
    %62 = vector.broadcast %61 : vector<1x32xf32> to vector<8x32xf32>
    %63 = arith.subf %57, %62 : vector<8x32xf32>
    %64 = vector.broadcast %61 : vector<1x32xf32> to vector<8x32xf32>
    %65 = arith.subf %57, %64 : vector<8x32xf32>
    %66 = arith.mulf %63, %65 : vector<8x32xf32>
    %cst_21 = arith.constant dense<0.000000e+00> : vector<32xf32>
    %67 = vector.multi_reduction <add>, %66, %cst_21 [0] : vector<8x32xf32> to vector<32xf32>
    %68 = vector.shape_cast %67 : vector<32xf32> to vector<1x32xf32>
    %cst_22 = arith.constant 8.000000e+00 : f32
    %69 = vector.broadcast %cst_22 : f32 to vector<1x32xf32>
    %70 = arith.divf %68, %69 : vector<1x32xf32>
    %71 = vector.broadcast %61 : vector<1x32xf32> to vector<8x32xf32>
    %72 = arith.subf %57, %71 : vector<8x32xf32>
    %cst_23 = arith.constant 9.99999974E-6 : f32
    %73 = vector.broadcast %cst_23 : f32 to vector<1x32xf32>
    %74 = arith.addf %70, %73 : vector<1x32xf32>
    %75 = math.rsqrt %74 : vector<1x32xf32>
    %76 = vector.broadcast %75 : vector<1x32xf32> to vector<8x32xf32>
    %77 = arith.mulf %72, %76 : vector<8x32xf32>
    %78 = vector.broadcast %10 : vector<1x32xf32> to vector<8x32xf32>
    %79 = arith.mulf %77, %78 : vector<8x32xf32>
    %80 = vector.broadcast %11 : vector<1x32xf32> to vector<8x32xf32>
    %81 = arith.addf %79, %80 : vector<8x32xf32>
    %cst_24 = arith.constant 0.000000e+00 : f32
    %82 = vector.broadcast %cst_24 : f32 to vector<8x32xf32>
    %83 = arith.maximumf %81, %82 : vector<8x32xf32>
    %84 = arith.addf %83, %50 : vector<8x32xf32>
    %c1_i32_25 = arith.constant 1 : i32
    %85 = tpu.memref_slice %arg10[%c1_i32_25] : memref<2x!tpu.dma_semaphore, #tpu.memory_space<semaphore_mem>> -> memref<1x!tpu.dma_semaphore, #tpu.memory_space<semaphore_mem>>
    %86 = tpu.memref_squeeze %85 : memref<1x!tpu.dma_semaphore, #tpu.memory_space<semaphore_mem>> -> memref<!tpu.dma_semaphore, #tpu.memory_space<semaphore_mem>>
    tpu.wait_dma2 semaphore(%86 : memref<!tpu.dma_semaphore, #tpu.memory_space<semaphore_mem>>) src(%arg6 : memref<32x128xbf16, #tpu.memory_space<any>>) dst(%arg9 : memref<32x128xbf16, #tpu.memory_space<vmem>>)
    %87 = arith.truncf %84 : vector<8x32xf32> to vector<8x32xbf16>
    %c0_26 = arith.constant 0 : index
    %c0_27 = arith.constant 0 : index
    %88 = vector.load %arg9[%c0_26, %c0_27] : memref<32x128xbf16, #tpu.memory_space<vmem>>, vector<32x128xbf16>
    %cst_28 = arith.constant dense<0.000000e+00> : vector<8x128xf32>
    %89 = tpu.matmul %87, %88, %cst_28 {dimension_numbers = #tpu.dot_dimension_numbers<[1], [0], [0], [1], [0, 0, 1, 1], [], []>} : vector<8x32xbf16>, vector<32x128xbf16>, vector<8x128xf32> -> vector<8x128xf32>
    %c0_29 = arith.constant 0 : index
    %c0_30 = arith.constant 0 : index
    %90 = vector.load %arg4[%c0_29, %c0_30] : memref<1x128xf32, #tpu.memory_space<vmem>>, vector<1x128xf32>
    %91 = vector.broadcast %90 : vector<1x128xf32> to vector<8x128xf32>
    %92 = arith.addf %89, %91 : vector<8x128xf32>
    %c0_31 = arith.constant 0 : index
    %c0_32 = arith.constant 0 : index
    %93 = vector.load %arg7[%c0_31, %c0_32] : memref<8x128xf32, #tpu.memory_space<vmem>>, vector<8x128xf32>
    tpu.vector_store %arg7[%c0_31, %c0_32], %92 {strides = array<i32>} : memref<8x128xf32, #tpu.memory_space<vmem>>, vector<8x128xf32>,
    return
  }
}

</mosaic_0001>

<llo_original>
// kernel: mlp_forward.1
$region0: #{mlp_forward.1}
  #allocation0 [shape = 'u32[]', space=smem, size = 0x4, offset = 0x4, fixed_abs, tag = 'smem constant byte address 0x4 - core index']
  #allocation1 [shape = 'u32[144,128]{1,0:T(1,128)}', space=vmem, size = 0x12000, scoped, tag = 'internal scratch']
  #allocation2 [shape = 'bf16[32,32]{1,0:T(16,128)(2,1)}', space=vmem, size = 0x2000, scoped, tag = 'scratch operand']
  #allocation3 [shape = 'bf16[32,128]{1,0:T(16,128)(2,1)}', space=vmem, size = 0x2000, scoped, tag = 'scratch operand']
  #allocation4 [shape = 's32[2]{0}', space=sflag, size = 0x8, scoped, tag = 'scratch operand']
  #allocation7 [shape = 's32[]', space=sflag, size = 0x4, offset = 0, fixed_abs, tag = 'sflag constant byte address 0x0 - dummy sync flag']
  #allocation8 [shape = 's32[]', space=sflag, size = 0x4, offset = 0, fixed_abs, tag = 'sflag constant byte address 0x0 - dummy sync flag']
  %s0 = inlined_call_operand.vmem [shape: bf16[8,32], index: 0, kind: input, shape index: {}]
  %s1 = inlined_call_operand.vmem [shape: bf16[32,32], index: 1, kind: input, shape index: {}]
  %s2 = inlined_call_operand.vmem [shape: bf16[32,32], index: 2, kind: input, shape index: {}]
  %s3 = inlined_call_operand.vmem [shape: f32[8,32], index: 3, kind: input, shape index: {}]
  %s4 = inlined_call_operand.vmem [shape: f32[1,128], index: 4, kind: input, shape index: {}]
  %s5 = inlined_call_operand.vmem [shape: bf16[32,32], index: 5, kind: input, shape index: {}]
  %s6 = inlined_call_operand.vmem [shape: bf16[32,128], index: 6, kind: input, shape index: {}]
  %s7 = inlined_call_operand.hbm [shape: f32[8,128], index: 7, kind: output, shape index: {}]
  %s8 = sld [smem:[#allocation0]]
  $region98: #{mlp_forward.1} parent=0
    _
  %s10 = ssub.s32 1, %s8
  %s11 = scalar_select 0, %s10, %s8
  $region1: #{mlp_forward.1} parent=0
    #allocation5 [shape = 'u8[4096]{0}', space=vmem, size = 0x1000, scoped, tag = 'output window, operand 0, single buffered']
    #allocation6 [shape = 's32[1]{0}', space=sflag, size = 0x4, scoped, tag = 'scoped memory for mlp_forward.1']
    %12 = vsyncpa [#allocation6], 0
    // Predicated region
    $region2: #{mlp_forward.1} parent=1 // pred_check
      _
    $region3: #{mlp_forward.1} parent=1 // pred_check_branch
      %14 = sbr.rel (0) target = $region5
    $region4: #{mlp_forward.1} parent=1 // pred_region
      _
    $region5: #{mlp_forward.1} parent=1 // pred_fallthru
      _
    // Predicated region
    $region6: #{mlp_forward.1} parent=1 // pred_check
      _
    $region7: #{mlp_forward.1} parent=1 // pred_check_branch
      %16 = sbr.rel (0) target = $region9
    $region8: #{mlp_forward.1} parent=1 // pred_region
      _
    $region9: #{mlp_forward.1} parent=1 // pred_fallthru
      _
    // Predicated region
    $region10: #{mlp_forward.1} parent=1 // pred_check
      _
    $region11: #{mlp_forward.1} parent=1 // pred_check_branch
      %18 = sbr.rel (0) target = $region13
    $region12: #{mlp_forward.1} parent=1 // pred_region
      _
    $region13: #{mlp_forward.1} parent=1 // pred_fallthru
      _
    // Predicated region
    $region14: #{mlp_forward.1} parent=1 // pred_check
      _
    $region15: #{mlp_forward.1} parent=1 // pred_check_branch
      %20 = sbr.rel (0) target = $region17
    $region16: #{mlp_forward.1} parent=1 // pred_region
      _
    $region17: #{mlp_forward.1} parent=1 // pred_fallthru
      _
    // Predicated region
    $region18: #{mlp_forward.1} parent=1 // pred_check
      _
    $region19: #{mlp_forward.1} parent=1 // pred_check_branch
      %22 = sbr.rel (0) target = $region21
    $region20: #{mlp_forward.1} parent=1 // pred_region
      _
    $region21: #{mlp_forward.1} parent=1 // pred_fallthru
      _
    %p25 = scmp.lt.u32.totalorder 16, 8
    %p26 = pneg %p25
    // Predicated region
    $region22: #{mlp_forward.1} parent=1 // pred_check
      _
    $region23: #{mlp_forward.1} parent=1 // pred_check_branch
      %28 = sbr.rel (%p25) target = $region25
    $region24: #{mlp_forward.1} parent=1 // pred_region
      %s43 = sand.u32 16, 7
      %p44 = scmp.eq.s32.totalorder %s43, 0
      // Predicated region
      $region37: #{mlp_forward.1} parent=24 // pred_check
        %p45 = pneg %p44
      $region38: #{mlp_forward.1} parent=24 // pred_check_branch
        %47 = sbr.rel (%p45) target = $region40
      $region39: #{mlp_forward.1} parent=24 // pred_region
        loop: start=0, step=1, limit=1
        $region41: #{mlp_forward.1} parent=39 // loop_pre_header
          _
        $region42: #{mlp_forward.1} parent=39 // loop_header
          %s49 = sphi 0, %s53
          %p50 = scmp.ge.s32.totalorder %s49, 1
          %s54 = sphi %s5, %s5
          %s55 = sphi [#allocation2], [#allocation2]
        $region43: #{mlp_forward.1} parent=39 // loop_header_branch
          %52 = sbr.rel (%p50) target = $region47
        $region44: #{mlp_forward.1} parent=39 // loop_body
          %v56 = vld [vmem:[%s54] sm:$0xff]
          %57 = vst [vmem:[%s55] sm:$0xff] %v56
          %v58 = vld [vmem:[%s54 + $0x8] sm:$0xff]
          %59 = vst [vmem:[%s55 + $0x8] sm:$0xff] %v58
        $region45: #{mlp_forward.1} parent=39 // loop_footer
          %s53 = sadd.s32 1, %s49
        $region46: #{mlp_forward.1} parent=39 // loop_footer_branch
          %48 = sbr.rel target = $region42
        $region47: #{mlp_forward.1} parent=39 // loop_exit
          _
      $region40: #{mlp_forward.1} parent=24 // pred_fallthru
        _
      %p60 = pneg %p44
      // Predicated region
      $region48: #{mlp_forward.1} parent=24 // pred_check
        _
      $region49: #{mlp_forward.1} parent=24 // pred_check_branch
        %62 = sbr.rel (%p44) target = $region51
      $region50: #{mlp_forward.1} parent=24 // pred_region
        %s63 = sand.u32 16, 7
      $region51: #{mlp_forward.1} parent=24 // pred_fallthru
        _
    $region25: #{mlp_forward.1} parent=1 // pred_fallthru
      _
    // Predicated region
    $region26: #{mlp_forward.1} parent=1 // pred_check
      %p29 = pneg %p25
    $region27: #{mlp_forward.1} parent=1 // pred_check_branch
      %31 = sbr.rel (%p29) target = $region29
    $region28: #{mlp_forward.1} parent=1 // pred_region
      %s32 = sshllo.u32 0, 16
      loop: start=0, step=1, limit=1
      $region30: #{mlp_forward.1} parent=28 // loop_pre_header
        _
      $region31: #{mlp_forward.1} parent=28 // loop_header
        %s34 = sphi 0, %s38
        %p35 = scmp.ge.s32.totalorder %s34, 1
        %s39 = sphi %s5, %s5
        %s40 = sphi [#allocation2], [#allocation2]
      $region32: #{mlp_forward.1} parent=28 // loop_header_branch
        %37 = sbr.rel (%p35) target = $region36
      $region33: #{mlp_forward.1} parent=28 // loop_body
        %v41 = vld [vmem:[%s39] sm:%s32]
        %42 = vst [vmem:[%s40] sm:%s32] %v41
      $region34: #{mlp_forward.1} parent=28 // loop_footer
        %s38 = sadd.s32 1, %s34
      $region35: #{mlp_forward.1} parent=28 // loop_footer_branch
        %33 = sbr.rel target = $region31
      $region36: #{mlp_forward.1} parent=28 // loop_exit
        _
    $region29: #{mlp_forward.1} parent=1 // pred_fallthru
      _
    // Predicated region
    $region52: #{mlp_forward.1} parent=1 // pred_check
      _
    $region53: #{mlp_forward.1} parent=1 // pred_check_branch
      %66 = sbr.rel (0) target = $region55
    $region54: #{mlp_forward.1} parent=1 // pred_region
      %67 = vsyncadd [#allocation4], 256
    $region55: #{mlp_forward.1} parent=1 // pred_fallthru
      _
    %s68 = scalar_lea.sflag [#allocation4], 1
    %p70 = scmp.lt.u32.totalorder 16, 8
    %p71 = pneg %p70
    // Predicated region
    $region56: #{mlp_forward.1} parent=1 // pred_check
      _
    $region57: #{mlp_forward.1} parent=1 // pred_check_branch
      %73 = sbr.rel (%p70) target = $region59
    $region58: #{mlp_forward.1} parent=1 // pred_region
      %s88 = sand.u32 16, 7
      %p89 = scmp.eq.s32.totalorder %s88, 0
      // Predicated region
      $region71: #{mlp_forward.1} parent=58 // pred_check
        %p90 = pneg %p89
      $region72: #{mlp_forward.1} parent=58 // pred_check_branch
        %92 = sbr.rel (%p90) target = $region74
      $region73: #{mlp_forward.1} parent=58 // pred_region
        loop: start=0, step=1, limit=1
        $region75: #{mlp_forward.1} parent=73 // loop_pre_header
          _
        $region76: #{mlp_forward.1} parent=73 // loop_header
          %s94 = sphi 0, %s98
          %p95 = scmp.ge.s32.totalorder %s94, 1
          %s99 = sphi %s6, %s6
          %s100 = sphi [#allocation3], [#allocation3]
        $region77: #{mlp_forward.1} parent=73 // loop_header_branch
          %97 = sbr.rel (%p95) target = $region81
        $region78: #{mlp_forward.1} parent=73 // loop_body
          %v101 = vld [vmem:[%s99] sm:$0xff]
          %102 = vst [vmem:[%s100] sm:$0xff] %v101
          %v103 = vld [vmem:[%s99 + $0x8] sm:$0xff]
          %104 = vst [vmem:[%s100 + $0x8] sm:$0xff] %v103
        $region79: #{mlp_forward.1} parent=73 // loop_footer
          %s98 = sadd.s32 1, %s94
        $region80: #{mlp_forward.1} parent=73 // loop_footer_branch
          %93 = sbr.rel target = $region76
        $region81: #{mlp_forward.1} parent=73 // loop_exit
          _
      $region74: #{mlp_forward.1} parent=58 // pred_fallthru
        _
      %p105 = pneg %p89
      // Predicated region
      $region82: #{mlp_forward.1} parent=58 // pred_check
        _
      $region83: #{mlp_forward.1} parent=58 // pred_check_branch
        %107 = sbr.rel (%p89) target = $region85
      $region84: #{mlp_forward.1} parent=58 // pred_region
        %s108 = sand.u32 16, 7
      $region85: #{mlp_forward.1} parent=58 // pred_fallthru
        _
    $region59: #{mlp_forward.1} parent=1 // pred_fallthru
      _
    // Predicated region
    $region60: #{mlp_forward.1} parent=1 // pred_check
      %p74 = pneg %p70
    $region61: #{mlp_forward.1} parent=1 // pred_check_branch
      %76 = sbr.rel (%p74) target = $region63
    $region62: #{mlp_forward.1} parent=1 // pred_region
      %s77 = sshllo.u32 0, 16
      loop: start=0, step=1, limit=1
      $region64: #{mlp_forward.1} parent=62 // loop_pre_header
        _
      $region65: #{mlp_forward.1} parent=62 // loop_header
        %s79 = sphi 0, %s83
        %p80 = scmp.ge.s32.totalorder %s79, 1
        %s84 = sphi %s6, %s6
        %s85 = sphi [#allocation3], [#allocation3]
      $region66: #{mlp_forward.1} parent=62 // loop_header_branch
        %82 = sbr.rel (%p80) target = $region70
      $region67: #{mlp_forward.1} parent=62 // loop_body
        %v86 = vld [vmem:[%s84] sm:%s77]
        %87 = vst [vmem:[%s85] sm:%s77] %v86
      $region68: #{mlp_forward.1} parent=62 // loop_footer
        %s83 = sadd.s32 1, %s79
      $region69: #{mlp_forward.1} parent=62 // loop_footer_branch
        %78 = sbr.rel target = $region65
      $region70: #{mlp_forward.1} parent=62 // loop_exit
        _
    $region63: #{mlp_forward.1} parent=1 // pred_fallthru
      _
    // Predicated region
    $region86: #{mlp_forward.1} parent=1 // pred_check
      _
    $region87: #{mlp_forward.1} parent=1 // pred_check_branch
      %111 = sbr.rel (0) target = $region89
    $region88: #{mlp_forward.1} parent=1 // pred_region
      %112 = vsyncadd %s68, 256
    $region89: #{mlp_forward.1} parent=1 // pred_fallthru
      _
    %v113 = vld [vmem:[%s3] sm:$0xff]
    %v114 = vld [vmem:[%s0] sm:$0xf]
    %v115 = vld [vmem:[%s1] sm:$0xf]
    %v116 = vld [vmem:[%s1 + $0x4] sm:$0xf]
    %v117 = vld [vmem:[%s1 + $0x8] sm:$0xf]
    %v118 = vld [vmem:[%s1 + $0xc] sm:$0xf]
    %v119 = vlaneseq
    %v120 = vshrl.u32 %v119, 7
    %v121 = vsub.s32 0, %v120
    %v122 = vrot.slane %v113, %v121
    %v127 = vunpack.c.l.b16 %v115
    %v128 = vunpack.c.l.b16 %v116
    %v129 = vunpack.c.l.b16 %v117
    %v130 = vunpack.c.l.b16 %v118
    %v131 = vpack.c.b16 %v128, %v127
    %v132 = vpack.c.b16 %v130, %v129
    %vm135 = vcmask 261120
    %v137 = vsel %vm135, %v114, 0
    %139 = vmatprep.subr.bf16.mxu0 0
    %140 = vmatpush1.bf16.msra.mxu0 %v131
    %141 = vmatprep.subr.bf16.mxu0 0
    %142 = vmatpush1.bf16.msra.mxu0 %v132
    %143 = vmatprep.subr.bf16.mxu0 0
    %144 = vmatpush1.bf16.msra.mxu0 0
    %145 = vmatprep.subr.bf16.mxu0 0
    %146 = vmatpush1.bf16.msra.mxu0 0
    %147 = vmatprep.subr.bf16.mxu0 0
    %148 = vmatpush1.bf16.msra.mxu0 0
    %149 = vmatprep.subr.bf16.mxu0 0
    %150 = vmatpush1.bf16.msra.mxu0 0
    %151 = vmatprep.subr.bf16.mxu0 0
    %152 = vmatpush1.bf16.msra.mxu0 0
    %153 = vmatprep.subr.bf16.mxu0 0
    %154 = vmatpush1.bf16.msra.mxu0 0
    %155 = vmatprep.subr.bf16.mxu0 0
    %156 = vmatpush1.bf16.msra.mxu0 0
    %157 = vmatprep.subr.bf16.mxu0 0
    %158 = vmatpush1.bf16.msra.mxu0 0
    %159 = vmatprep.subr.bf16.mxu0 0
    %160 = vmatpush1.bf16.msra.mxu0 0
    %161 = vmatprep.subr.bf16.mxu0 0
    %162 = vmatpush1.bf16.msra.mxu0 0
    %163 = vmatprep.subr.bf16.mxu0 0
    %164 = vmatpush1.bf16.msra.mxu0 0
    %165 = vmatprep.subr.bf16.mxu0 0
    %166 = vmatpush1.bf16.msra.mxu0 0
    %167 = vmatprep.subr.bf16.mxu0 0
    %168 = vmatpush1.bf16.msra.mxu0 0
    %169 = vmatprep.subr.bf16.mxu0 0
    %170 = vmatpush1.bf16.msra.mxu0 0
    %171 = vmatprep.mubr.bf16.mxu0 0
    %172 = vmatmul.mubr.bf16.gmra.mrb[0].mxu0 %v137
    %v173 = vpop.f32.mrb[0].mxu0
    %v174 = vadd.f32 %v122, %v173
    %v175 = vpop.f32.mrb[0].mxu0
    %v176 = vpop.f32.mrb[0].mxu0
    %v177 = vpop.f32.mrb[0].mxu0
    %178 = vdwg.mxu0
    %v179 = vmax.f32 %v174, 0.0
    %v180 = vld [vmem:[%s2] sm:$0xf]
    %v181 = vld [vmem:[%s2 + $0x4] sm:$0xf]
    %v182 = vld [vmem:[%s2 + $0x8] sm:$0xf]
    %v183 = vld [vmem:[%s2 + $0xc] sm:$0xf]
    %v184 = vpack.c.bf16 %v179, %v179
    %v185 = vlaneseq
    %v186 = vshrl.u32 %v185, 7
    %v187 = vsub.s32 1, %v186
    %v188 = vrot.slane %v113, %v187
    %v193 = vunpack.c.l.b16 %v180
    %v194 = vunpack.c.l.b16 %v181
    %v195 = vunpack.c.l.b16 %v182
    %v196 = vunpack.c.l.b16 %v183
    %v197 = vpack.c.b16 %v194, %v193
    %v198 = vpack.c.b16 %v196, %v195
    %v202 = vsel %vm135, %v184, 0
    %204 = vmatprep.subr.bf16.mxu0 0
    %205 = vmatpush1.bf16.msra.mxu0 %v197
    %206 = vmatprep.subr.bf16.mxu0 0
    %207 = vmatpush1.bf16.msra.mxu0 %v198
    %208 = vmatprep.subr.bf16.mxu0 0
    %209 = vmatpush1.bf16.msra.mxu0 0
    %210 = vmatprep.subr.bf16.mxu0 0
    %211 = vmatpush1.bf16.msra.mxu0 0
    %212 = vmatprep.subr.bf16.mxu0 0
    %213 = vmatpush1.bf16.msra.mxu0 0
    %214 = vmatprep.subr.bf16.mxu0 0
    %215 = vmatpush1.bf16.msra.mxu0 0
    %216 = vmatprep.subr.bf16.mxu0 0
    %217 = vmatpush1.bf16.msra.mxu0 0
    %218 = vmatprep.subr.bf16.mxu0 0
    %219 = vmatpush1.bf16.msra.mxu0 0
    %220 = vmatprep.subr.bf16.mxu0 0
    %221 = vmatpush1.bf16.msra.mxu0 0
    %222 = vmatprep.subr.bf16.mxu0 0
    %223 = vmatpush1.bf16.msra.mxu0 0
    %224 = vmatprep.subr.bf16.mxu0 0
    %225 = vmatpush1.bf16.msra.mxu0 0
    %226 = vmatprep.subr.bf16.mxu0 0
    %227 = vmatpush1.bf16.msra.mxu0 0
    %228 = vmatprep.subr.bf16.mxu0 0
    %229 = vmatpush1.bf16.msra.mxu0 0
    %230 = vmatprep.subr.bf16.mxu0 0
    %231 = vmatpush1.bf16.msra.mxu0 0
    %232 = vmatprep.subr.bf16.mxu0 0
    %233 = vmatpush1.bf16.msra.mxu0 0
    %234 = vmatprep.subr.bf16.mxu0 0
    %235 = vmatpush1.bf16.msra.mxu0 0
    %236 = vmatprep.mubr.bf16.mxu0 0
    %237 = vmatmul.mubr.bf16.gmra.mrb[0].mxu0 %v202
    %v238 = vpop.f32.mrb[0].mxu0
    %v239 = vadd.f32 %v188, %v238
    %v240 = vpop.f32.mrb[0].mxu0
    %v241 = vpop.f32.mrb[0].mxu0
    %v242 = vpop.f32.mrb[0].mxu0
    %243 = vdwg.mxu0
    %v244 = vsel %vm135, %v239, 0.0
    %v245 = vrot.slane %v244, 4
    %v246 = vadd.f32 %v244, %v245
    %v247 = vrot.slane %v246, 2
    %v248 = vadd.f32 %v246, %v247
    %v249 = vrot.slane %v248, 1
    %v250 = vadd.f32 %v248, %v249
    %v251 = vrcp.pop 8.0
    %v252 = vmul.f32 %v250, %v251
    %v253 = vsub.f32 %v239, %v252
    %v254 = vmul.f32 %v253, %v253
    %v255 = vsel %vm135, %v254, 0.0
    %v256 = vrot.slane %v255, 4
    %v257 = vadd.f32 %v255, %v256
    %v258 = vrot.slane %v257, 2
    %v259 = vadd.f32 %v257, %v258
    %v260 = vrot.slane %v259, 1
    %v261 = vadd.f32 %v259, %v260
    %v262 = vmul.f32 %v261, %v251
    %v263 = vadd.f32 %v262, 1e-05
    %v264 = vrsqrt.pop %v263
    %v265 = vmul.f32 %v253, %v264
    %v266 = vlaneseq
    %v267 = vshrl.u32 %v266, 7
    %v268 = vsub.s32 2, %v267
    %v269 = vrot.slane %v113, %v268
    %v270 = vmul.f32 %v265, %v269
    %v271 = vlaneseq
    %v272 = vshrl.u32 %v271, 7
    %v273 = vsub.s32 3, %v272
    %v274 = vrot.slane %v113, %v273
    %v275 = vadd.f32 %v270, %v274
    %v276 = vmax.f32 %v275, 0.0
    %v277 = vadd.f32 %v276, %v179
    %s278 = smul.u32 4, 4
    %s279 = smul.u32 %s278, 1
    %s280 = sshll.u32 %s279, 4
    %281 = dma.done [#allocation4], %s280
    %v282 = vld [vmem:[#allocation2] sm:$0xff]
    %v283 = vld [vmem:[#allocation2 + $0x8] sm:$0xff]
    %v284 = vpack.c.bf16 %v277, %v277
    %v285 = vlaneseq
    %v286 = vshrl.u32 %v285, 7
    %v287 = vsub.s32 4, %v286
    %v288 = vrot.slane %v113, %v287
    %v290 = vsel %vm135, %v284, 0
    %292 = vmatprep.subr.bf16.mxu0 0
    %293 = vmatpush1.bf16.msra.mxu0 %v282
    %294 = vmatprep.subr.bf16.mxu0 0
    %295 = vmatpush1.bf16.msra.mxu0 %v283
    %296 = vmatprep.subr.bf16.mxu0 0
    %297 = vmatpush1.bf16.msra.mxu0 0
    %298 = vmatprep.subr.bf16.mxu0 0
    %299 = vmatpush1.bf16.msra.mxu0 0
    %300 = vmatprep.subr.bf16.mxu0 0
    %301 = vmatpush1.bf16.msra.mxu0 0
    %302 = vmatprep.subr.bf16.mxu0 0
    %303 = vmatpush1.bf16.msra.mxu0 0
    %304 = vmatprep.subr.bf16.mxu0 0
    %305 = vmatpush1.bf16.msra.mxu0 0
    %306 = vmatprep.subr.bf16.mxu0 0
    %307 = vmatpush1.bf16.msra.mxu0 0
    %308 = vmatprep.subr.bf16.mxu0 0
    %309 = vmatpush1.bf16.msra.mxu0 0
    %310 = vmatprep.subr.bf16.mxu0 0
    %311 = vmatpush1.bf16.msra.mxu0 0
    %312 = vmatprep.subr.bf16.mxu0 0
    %313 = vmatpush1.bf16.msra.mxu0 0
    %314 = vmatprep.subr.bf16.mxu0 0
    %315 = vmatpush1.bf16.msra.mxu0 0
    %316 = vmatprep.subr.bf16.mxu0 0
    %317 = vmatpush1.bf16.msra.mxu0 0
    %318 = vmatprep.subr.bf16.mxu0 0
    %319 = vmatpush1.bf16.msra.mxu0 0
    %320 = vmatprep.subr.bf16.mxu0 0
    %321 = vmatpush1.bf16.msra.mxu0 0
    %322 = vmatprep.subr.bf16.mxu0 0
    %323 = vmatpush1.bf16.msra.mxu0 0
    %324 = vmatprep.mubr.bf16.mxu0 0
    %325 = vmatmul.mubr.bf16.gmra.mrb[0].mxu0 %v290
    %v326 = vpop.f32.mrb[0].mxu0
    %v327 = vadd.f32 %v288, %v326
    %v328 = vpop.f32.mrb[0].mxu0
    %v329 = vpop.f32.mrb[0].mxu0
    %v330 = vpop.f32.mrb[0].mxu0
    %331 = vdwg.mxu0
    %v332 = vsel %vm135, %v327, 0.0
    %v333 = vrot.slane %v332, 4
    %v334 = vadd.f32 %v332, %v333
    %v335 = vrot.slane %v334, 2
    %v336 = vadd.f32 %v334, %v335
    %v337 = vrot.slane %v336, 1
    %v338 = vadd.f32 %v336, %v337
    %v339 = vmul.f32 %v338, %v251
    %v340 = vsub.f32 %v327, %v339
    %v341 = vmul.f32 %v340, %v340
    %v342 = vsel %vm135, %v341, 0.0
    %v343 = vrot.slane %v342, 4
    %v344 = vadd.f32 %v342, %v343
    %v345 = vrot.slane %v344, 2
    %v346 = vadd.f32 %v344, %v345
    %v347 = vrot.slane %v346, 1
    %v348 = vadd.f32 %v346, %v347
    %v349 = vmul.f32 %v348, %v251
    %v350 = vadd.f32 %v349, 1e-05
    %v351 = vrsqrt.pop %v350
    %v352 = vmul.f32 %v340, %v351
    %v353 = vlaneseq
    %v354 = vshrl.u32 %v353, 7
    %v355 = vsub.s32 5, %v354
    %v356 = vrot.slane %v113, %v355
    %v357 = vmul.f32 %v352, %v356
    %v358 = vlaneseq
    %v359 = vshrl.u32 %v358, 7
    %v360 = vsub.s32 6, %v359
    %v361 = vrot.slane %v113, %v360
    %v362 = vadd.f32 %v357, %v361
    %v363 = vmax.f32 %v362, 0.0
    %v364 = vadd.f32 %v363, %v277
    %s365 = sshll.u32 %s279, 4
    %366 = dma.done %s68, %s365
    %v367 = vpack.c.bf16 %v364, %v364
    %v368 = vld [vmem:[#allocation3] sm:$0xff]
    %v369 = vld [vmem:[#allocation3 + $0x8] sm:$0xff]
    %v370 = vld [vmem:[%s4] sm:$0x1]
    %v372 = vlaneseq
    %v373 = vshrl.u32 %v372, 7
    %v374 = vsub.s32 0, %v373
    %v375 = vrot.slane %v370, %v374
    %v378 = vsel %vm135, %v367, 0
    %380 = vmatprep.subr.bf16.mxu0 0
    %381 = vmatpush1.bf16.msra.mxu0 %v368
    %382 = vmatprep.subr.bf16.mxu0 0
    %383 = vmatpush1.bf16.msra.mxu0 %v369
    %384 = vmatprep.subr.bf16.mxu0 0
    %385 = vmatpush1.bf16.msra.mxu0 0
    %386 = vmatprep.subr.bf16.mxu0 0
    %387 = vmatpush1.bf16.msra.mxu0 0
    %388 = vmatprep.subr.bf16.mxu0 0
    %389 = vmatpush1.bf16.msra.mxu0 0
    %390 = vmatprep.subr.bf16.mxu0 0
    %391 = vmatpush1.bf16.msra.mxu0 0
    %392 = vmatprep.subr.bf16.mxu0 0
    %393 = vmatpush1.bf16.msra.mxu0 0
    %394 = vmatprep.subr.bf16.mxu0 0
    %395 = vmatpush1.bf16.msra.mxu0 0
    %396 = vmatprep.subr.bf16.mxu0 0
    %397 = vmatpush1.bf16.msra.mxu0 0
    %398 = vmatprep.subr.bf16.mxu0 0
    %399 = vmatpush1.bf16.msra.mxu0 0
    %400 = vmatprep.subr.bf16.mxu0 0
    %401 = vmatpush1.bf16.msra.mxu0 0
    %402 = vmatprep.subr.bf16.mxu0 0
    %403 = vmatpush1.bf16.msra.mxu0 0
    %404 = vmatprep.subr.bf16.mxu0 0
    %405 = vmatpush1.bf16.msra.mxu0 0
    %406 = vmatprep.subr.bf16.mxu0 0
    %407 = vmatpush1.bf16.msra.mxu0 0
    %408 = vmatprep.subr.bf16.mxu0 0
    %409 = vmatpush1.bf16.msra.mxu0 0
    %410 = vmatprep.subr.bf16.mxu0 0
    %411 = vmatpush1.bf16.msra.mxu0 0
    %412 = vmatprep.mubr.bf16.mxu0 0
    %413 = vmatmul.mubr.bf16.gmra.mrb[0].mxu0 %v378
    %v414 = vpop.f32.mrb[0].mxu0
    %v415 = vadd.f32 %v375, %v414
    %v416 = vpop.f32.mrb[0].mxu0
    %v417 = vpop.f32.mrb[0].mxu0
    %v418 = vpop.f32.mrb[0].mxu0
    %419 = vdwg.mxu0
    %420 = vst [vmem:[#allocation5] sm:$0xff] %v415
    // Predicated region
    $region90: #{mlp_forward.1} parent=1 // pred_check
      _
    $region91: #{mlp_forward.1} parent=1 // pred_check_branch
      %422 = sbr.rel (0) target = $region93
    $region92: #{mlp_forward.1} parent=1 // pred_region
      %s424 = ssub.s32 128, 128
      %425 = vsyncadd [#allocation6], %s424
      %s427 = sshll.u32 [#allocation5], 4
      %s428 = int_to_ptr.vmem [resolvable:$true] %s427
      %430 = dma.vmem_to_hbm [thread:$0]  %s428, 128, %s7, [#allocation6]
    $region93: #{mlp_forward.1} parent=1 // pred_fallthru
      _
    // Predicated region
    $region94: #{mlp_forward.1} parent=1 // pred_check
      _
    $region95: #{mlp_forward.1} parent=1 // pred_check_branch
      %432 = sbr.rel (0) target = $region97
    $region96: #{mlp_forward.1} parent=1 // pred_region
      %433 = dma.done [#allocation6], 128
    $region97: #{mlp_forward.1} parent=1 // pred_fallthru
      _
    %434 = vsyncpa [#allocation6], 1
  %435 = vsyncmov [#allocation4]
  %s436 = vpop.sfrf %435
  %p437 = scmp.eq.s32.totalorder %s436, 0
  %p438 = pneg %p437
  %440 = shalt.err (%p438)
  %s441 = scalar_lea.sflag [#allocation4], 1
  %442 = vsyncmov %s441
  %s443 = vpop.sfrf %442
  %p444 = scmp.eq.s32.totalorder %s443, 0
  %p445 = pneg %p444
  %447 = shalt.err (%p445)

</llo_original>
